<compile_context>
chip_gen: v6e
topology: v6e:2x2x1
jax: 0.10.0
libtpu: 0.0.40
codegen_flags: <defaults>
</compile_context>

<pallas_src>
import functools
import math

import jax
import jax.numpy as jnp
from jax import lax
from jax.experimental import pallas as pl
from jax.experimental.pallas import tpu as pltpu

_VMEM_LIMIT = 48 * 1024 * 1024  # fits v7x's 64 MiB physical VMEM; ample on v5e/v6e


def _round_up(a: int, b: int) -> int:
    return ((a + b - 1) // b) * b


# ---------------------------------------------------------------------------
# Kernel A: LayerNorm + fused QKV projection, tiled over (batch, seq rows).
# ---------------------------------------------------------------------------
def _ln_qkv_kernel(x_ref, gamma_ref, beta_ref, wqkv_ref, bqkv_ref, qkv_ref):
    xf = x_ref[0].astype(jnp.float32)                          # (TS, D)
    mean = jnp.mean(xf, axis=-1, keepdims=True)
    var = jnp.mean(jnp.square(xf - mean), axis=-1, keepdims=True)
    xn = (xf - mean) * lax.rsqrt(var + 1e-5)
    xn = xn * gamma_ref[...] + beta_ref[...]                   # f32 LayerNorm

    qkv = jnp.dot(xn.astype(jnp.bfloat16), wqkv_ref[...],
                  preferred_element_type=jnp.float32) + bqkv_ref[...]   # (TS, 3D)
    qkv_ref[0] = qkv.astype(jnp.bfloat16)                      # one lane-dense store


# ---------------------------------------------------------------------------
# Kernel B: flash attention, grid (batch, head, q-tile, k-tile).
# ---------------------------------------------------------------------------
def _flash_attn_kernel(q_ref, k_ref, v_ref, o_ref, m_scr, l_scr, acc_scr,
                       *, seq_len: int, k_tile: int, mask_keys: bool):
    ki = pl.program_id(3)

    @pl.when(ki == 0)
    def _():
        m_scr[...] = jnp.full_like(m_scr, -jnp.inf)
        l_scr[...] = jnp.zeros_like(l_scr)
        acc_scr[...] = jnp.zeros_like(acc_scr)

    # scores: contract over head dim without materializing k.T
    s = lax.dot_general(q_ref[0], k_ref[0], (((1,), (1,)), ((), ())),
                        preferred_element_type=jnp.float32)    # (TQ, TK) f32
    if mask_keys:  # static: only compiled when the sequence was padded
        kpos = ki * k_tile + lax.broadcasted_iota(jnp.int32, s.shape, 1)
        s = jnp.where(kpos < seq_len, s, -jnp.inf)
    # TODO(synk): optional user attention mask (module's mask=None path only).

    m_prev = m_scr[...]                                        # (TQ, 1)
    m_new = jnp.maximum(m_prev, jnp.max(s, axis=-1, keepdims=True))
    alpha = jnp.exp(m_prev - m_new)
    p = jnp.exp(s - m_new)                                     # f32 (v5e-safe)
    l_scr[...] = alpha * l_scr[...] + jnp.sum(p, axis=-1, keepdims=True)
    acc_scr[...] = alpha * acc_scr[...] + jnp.dot(
        p.astype(jnp.bfloat16), v_ref[0], preferred_element_type=jnp.float32)
    m_scr[...] = m_new

    @pl.when(ki == pl.num_programs(3) - 1)
    def _():
        # post-PV normalization: (TQ, dh) multiplies instead of (TQ, TK)
        o_ref[0] = (acc_scr[...] *
                    pl.reciprocal(l_scr[...], approx=True)).astype(o_ref.dtype)


# ---------------------------------------------------------------------------
# Kernel C: output projection (single D-deep matmul) + residual add.
# ---------------------------------------------------------------------------
def _proj_residual_kernel(att_ref, x_ref, wo_ref, bo_ref, out_ref):
    proj = jnp.dot(att_ref[0], wo_ref[...],
                   preferred_element_type=jnp.float32) + bo_ref[...]
    # TODO(synk): dropout is identity (inference); training would need pltpu.prng_*.
    out_ref[0] = (proj + x_ref[0].astype(jnp.float32)).astype(out_ref.dtype)


def encoder_attention_sublayer(x, params, n_heads, q_tile=256, k_tile=512):
    """out = x + MHA(LayerNorm(x), LayerNorm(x)).  Weights are (D_in, D_out)."""
    B, S, D = x.shape
    assert D % n_heads == 0
    dh = D // n_heads
    # Per-head Q/K/V views are BlockSpec column blocks of width dh on the flat
    # (S, 3D) QKV tensor, so dh must be lane aligned.
    # TODO(synk): support dh % 128 != 0 (e.g. pack several heads per block).
    assert dh % 128 == 0, "head_dim must be a multiple of 128 for this kernel"

    # Tile sizes clamp to the (padded) sequence; ragged S is padded to a tile
    # multiple and padded keys are masked in-kernel (no full-S fallback).
    TQ = min(q_tile, _round_up(S, 8))
    TK = min(k_tile, _round_up(S, 8))
    Sp = _round_up(S, math.lcm(TQ, TK))
    xp = jnp.pad(x, ((0, 0), (0, Sp - S), (0, 0))) if Sp != S else x
    NS, NQ, NK = Sp // TQ, Sp // TQ, Sp // TK

    # Fold 1/sqrt(dh) into the Q projection; fuse QKV weights into one bf16 operand.
    scale = 1.0 / math.sqrt(dh)
    w_qkv = jnp.concatenate([params["wq"] * scale, params["wk"], params["wv"]],
                            axis=1).astype(jnp.bfloat16)          # (D, 3D)
    b_qkv = jnp.concatenate([params["bq"] * scale, params["bk"], params["bv"]],
                            axis=1).astype(jnp.float32)           # (1, 3D)
    w_o = params["wo"].astype(jnp.bfloat16)                       # (D, D)
    b_o = params["bo"].astype(jnp.float32)                        # (1, D)
    gamma = params["gamma"].astype(jnp.float32)
    beta = params["beta"].astype(jnp.float32)

    # --- Kernel A: LayerNorm + QKV projection -------------------------------
    qkv = pl.pallas_call(
        _ln_qkv_kernel,
        out_shape=jax.ShapeDtypeStruct((B, Sp, 3 * D), jnp.bfloat16),
        grid_spec=pltpu.PrefetchScalarGridSpec(
            num_scalar_prefetch=0,
            grid=(B, NS),
            in_specs=[
                pl.BlockSpec((1, TQ, D), lambda b, s: (b, s, 0)),
                pl.BlockSpec((1, D), lambda b, s: (0, 0)),
                pl.BlockSpec((1, D), lambda b, s: (0, 0)),
                pl.BlockSpec((D, 3 * D), lambda b, s: (0, 0)),
                pl.BlockSpec((1, 3 * D), lambda b, s: (0, 0)),
            ],
            out_specs=pl.BlockSpec((1, TQ, 3 * D), lambda b, s: (b, s, 0)),
        ),
        compiler_params=pltpu.CompilerParams(
            dimension_semantics=("parallel", "parallel"),
            vmem_limit_bytes=_VMEM_LIMIT),
    )(xp, gamma, beta, w_qkv, b_qkv)

    # --- Kernel B: flash attention (online softmax, K-tiled) -----------------
    attn_kernel = functools.partial(_flash_attn_kernel, seq_len=S, k_tile=TK,
                                    mask_keys=(Sp != S))
    att = pl.pallas_call(
        attn_kernel,
        out_shape=jax.ShapeDtypeStruct((B, Sp, D), jnp.bfloat16),
        grid_spec=pltpu.PrefetchScalarGridSpec(
            num_scalar_prefetch=0,
            grid=(B, n_heads, NQ, NK),
            in_specs=[
                pl.BlockSpec((1, TQ, dh), lambda b, h, qi, ki: (b, qi, h)),
                pl.BlockSpec((1, TK, dh),
                             lambda b, h, qi, ki: (b, ki, n_heads + h)),
                pl.BlockSpec((1, TK, dh),
                             lambda b, h, qi, ki: (b, ki, 2 * n_heads + h)),
            ],
            out_specs=pl.BlockSpec((1, TQ, dh), lambda b, h, qi, ki: (b, qi, h)),
            scratch_shapes=[
                pltpu.VMEM((TQ, 1), jnp.float32),    # running max
                pltpu.VMEM((TQ, 1), jnp.float32),    # running sum
                pltpu.VMEM((TQ, dh), jnp.float32),   # running PV accumulator
            ],
        ),
        compiler_params=pltpu.CompilerParams(
            dimension_semantics=("parallel", "parallel", "parallel", "arbitrary"),
            vmem_limit_bytes=_VMEM_LIMIT),
    )(qkv, qkv, qkv)

    # --- Kernel C: output projection + residual ------------------------------
    out = pl.pallas_call(
        _proj_residual_kernel,
        out_shape=jax.ShapeDtypeStruct((B, Sp, D), x.dtype),
        grid_spec=pltpu.PrefetchScalarGridSpec(
            num_scalar_prefetch=0,
            grid=(B, NS),
            in_specs=[
                pl.BlockSpec((1, TQ, D), lambda b, s: (b, s, 0)),
                pl.BlockSpec((1, TQ, D), lambda b, s: (b, s, 0)),
                pl.BlockSpec((D, D), lambda b, s: (0, 0)),
                pl.BlockSpec((1, D), lambda b, s: (0, 0)),
            ],
            out_specs=pl.BlockSpec((1, TQ, D), lambda b, s: (b, s, 0)),
        ),
        compiler_params=pltpu.CompilerParams(
            dimension_semantics=("parallel", "parallel"),
            vmem_limit_bytes=_VMEM_LIMIT),
    )(att, xp, w_o, b_o)

    return out[:, :S, :] if Sp != S else out


def init_params(key, d_model):
    ks = jax.random.split(key, 8)
    std = 0.02

    def lin(kw, kb):
        w = std * jax.random.normal(kw, (d_model, d_model), jnp.float32)
        b = std * jax.random.normal(kb, (1, d_model), jnp.float32)
        return w, b

    wq, bq = lin(ks[0], ks[1])
    wk, bk = lin(ks[2], ks[3])
    wv, bv = lin(ks[4], ks[5])
    wo, bo = lin(ks[6], ks[7])
    return dict(
        gamma=jnp.ones((1, d_model), jnp.float32),
        beta=jnp.zeros((1, d_model), jnp.float32),
        wq=wq, bq=bq, wk=wk, bk=bk, wv=wv, bv=bv, wo=wo, bo=bo,
    )


def reference_forward(x, params, n_heads):
    """Pure-JAX f32 reference (inference path of the torch module)."""
    B, S, D = x.shape
    dh = D // n_heads
    mean = jnp.mean(x, axis=-1, keepdims=True)
    var = jnp.mean(jnp.square(x - mean), axis=-1, keepdims=True)
    xn = (x - mean) / jnp.sqrt(var + 1e-5) * params["gamma"] + params["beta"]
    q = xn @ params["wq"] + params["bq"]
    k = xn @ params["wk"] + params["bk"]
    v = xn @ params["wv"] + params["bv"]

    def split(t):
        return t.reshape(B, S, n_heads, dh).transpose(0, 2, 1, 3)

    qh, kh, vh = split(q), split(k), split(v)
    s = jnp.einsum("bhqd,bhkd->bhqk", qh, kh) / math.sqrt(dh)
    p = jax.nn.softmax(s, axis=-1)
    o = jnp.einsum("bhqk,bhkd->bhqd", p, vh)
    o = o.transpose(0, 2, 1, 3).reshape(B, S, D)
    return o @ params["wo"] + params["bo"] + x


if __name__ == "__main__":
    B, S, D, H = 2, 16, 256, 2     # d_model=256, head_dim=128 (lane aligned)
    key = jax.random.PRNGKey(0)
    kx, kp = jax.random.split(key)
    x = jax.random.normal(kx, (B, S, D), jnp.float32)
    params = init_params(kp, D)

    out = encoder_attention_sublayer(x, params, n_heads=H)
    jax.block_until_ready(out)
    assert out.shape == (B, S, D)
    assert jnp.all(jnp.isfinite(out))

    ref = reference_forward(x, params, n_heads=H)
    err = float(jnp.max(jnp.abs(out - ref)))
    assert err < 5e-2, f"max abs error too large: {err}"
    print("KERNEL_OK")
</pallas_src>

<mosaic_0001>
module attributes {stable_mosaic.version = 11 : i64} {
  func.func @_ln_qkv_kernel(%arg0: i32, %arg1: i32, %arg2: memref<1x16x256xf32, #tpu.memory_space<vmem>>, %arg3: memref<1x256xf32, #tpu.memory_space<vmem>>, %arg4: memref<1x256xf32, #tpu.memory_space<vmem>>, %arg5: memref<256x768xbf16, #tpu.memory_space<vmem>>, %arg6: memref<1x768xf32, #tpu.memory_space<vmem>>, %arg7: memref<1x16x768xbf16, #tpu.memory_space<vmem>>) attributes {dimension_semantics = [#tpu.dimension_semantics<parallel>, #tpu.dimension_semantics<parallel>], iteration_bounds = array<i64: 2, 1>, scalar_prefetch = 0 : i64, scratch_operands = 0 : i64, tpu.core_type = #tpu.core_type<tc>, window_params = [{transform_indices = @transform_0, window_bounds = array<i64: 1, 16, 256>}, {pipeline_mode = #tpu.pipeline_mode<synchronous>, transform_indices = @transform_1, window_bounds = array<i64: 1, 256>}, {pipeline_mode = #tpu.pipeline_mode<synchronous>, transform_indices = @transform_2, window_bounds = array<i64: 1, 256>}, {pipeline_mode = #tpu.pipeline_mode<synchronous>, transform_indices = @transform_3, window_bounds = array<i64: 256, 768>}, {pipeline_mode = #tpu.pipeline_mode<synchronous>, transform_indices = @transform_4, window_bounds = array<i64: 1, 768>}, {transform_indices = @transform_5, window_bounds = array<i64: 1, 16, 768>}]} {
    %c0 = arith.constant 0 : index
    %c0_0 = arith.constant 0 : index
    %c0_1 = arith.constant 0 : index
    %0 = vector.load %arg2[%c0, %c0_0, %c0_1] : memref<1x16x256xf32, #tpu.memory_space<vmem>>, vector<1x16x256xf32>
    %1 = vector.shape_cast %0 : vector<1x16x256xf32> to vector<16x256xf32>
    %cst = arith.constant dense<0.000000e+00> : vector<16xf32>
    %2 = vector.multi_reduction <add>, %1, %cst [1] : vector<16x256xf32> to vector<16xf32>
    %3 = vector.shape_cast %2 : vector<16xf32> to vector<16x1xf32>
    %cst_2 = arith.constant 2.560000e+02 : f32
    %4 = vector.broadcast %cst_2 : f32 to vector<16x1xf32>
    %5 = arith.divf %3, %4 : vector<16x1xf32>
    %6 = vector.broadcast %5 : vector<16x1xf32> to vector<16x256xf32>
    %7 = arith.subf %1, %6 : vector<16x256xf32>
    %8 = arith.mulf %7, %7 : vector<16x256xf32>
    %cst_3 = arith.constant dense<0.000000e+00> : vector<16xf32>
    %9 = vector.multi_reduction <add>, %8, %cst_3 [1] : vector<16x256xf32> to vector<16xf32>
    %10 = vector.shape_cast %9 : vector<16xf32> to vector<16x1xf32>
    %cst_4 = arith.constant 2.560000e+02 : f32
    %11 = vector.broadcast %cst_4 : f32 to vector<16x1xf32>
    %12 = arith.divf %10, %11 : vector<16x1xf32>
    %13 = vector.broadcast %5 : vector<16x1xf32> to vector<16x256xf32>
    %14 = arith.subf %1, %13 : vector<16x256xf32>
    %cst_5 = arith.constant 9.99999974E-6 : f32
    %15 = vector.broadcast %cst_5 : f32 to vector<16x1xf32>
    %16 = arith.addf %12, %15 : vector<16x1xf32>
    %17 = math.rsqrt %16 : vector<16x1xf32>
    %18 = vector.broadcast %17 : vector<16x1xf32> to vector<16x256xf32>
    %19 = arith.mulf %14, %18 : vector<16x256xf32>
    %c0_6 = arith.constant 0 : index
    %c0_7 = arith.constant 0 : index
    %20 = vector.load %arg3[%c0_6, %c0_7] : memref<1x256xf32, #tpu.memory_space<vmem>>, vector<1x256xf32>
    %21 = vector.broadcast %20 : vector<1x256xf32> to vector<16x256xf32>
    %22 = arith.mulf %19, %21 : vector<16x256xf32>
    %c0_8 = arith.constant 0 : index
    %c0_9 = arith.constant 0 : index
    %23 = vector.load %arg4[%c0_8, %c0_9] : memref<1x256xf32, #tpu.memory_space<vmem>>, vector<1x256xf32>
    %24 = vector.broadcast %23 : vector<1x256xf32> to vector<16x256xf32>
    %25 = arith.addf %22, %24 : vector<16x256xf32>
    %26 = arith.truncf %25 : vector<16x256xf32> to vector<16x256xbf16>
    %c0_10 = arith.constant 0 : index
    %c0_11 = arith.constant 0 : index
    %27 = vector.load %arg5[%c0_10, %c0_11] : memref<256x768xbf16, #tpu.memory_space<vmem>>, vector<256x768xbf16>
    %cst_12 = arith.constant dense<0.000000e+00> : vector<16x768xf32>
    %28 = tpu.matmul %26, %27, %cst_12 {dimension_numbers = #tpu.dot_dimension_numbers<[1], [0], [0], [1], [0, 0, 1, 1], [], []>} : vector<16x256xbf16>, vector<256x768xbf16>, vector<16x768xf32> -> vector<16x768xf32>
    %c0_13 = arith.constant 0 : index
    %c0_14 = arith.constant 0 : index
    %29 = vector.load %arg6[%c0_13, %c0_14] : memref<1x768xf32, #tpu.memory_space<vmem>>, vector<1x768xf32>
    %30 = vector.broadcast %29 : vector<1x768xf32> to vector<16x768xf32>
    %31 = arith.addf %28, %30 : vector<16x768xf32>
    %32 = arith.truncf %31 : vector<16x768xf32> to vector<16x768xbf16>
    %c0_15 = arith.constant 0 : index
    %c0_16 = arith.constant 0 : index
    %c0_17 = arith.constant 0 : index
    %33 = vector.load %arg7[%c0_15, %c0_16, %c0_17] : memref<1x16x768xbf16, #tpu.memory_space<vmem>>, vector<1x16x768xbf16>
    %34 = vector.shape_cast %33 : vector<1x16x768xbf16> to vector<16x768xbf16>
    %35 = vector.shape_cast %32 : vector<16x768xbf16> to vector<1x16x768xbf16>
    tpu.vector_store %arg7[%c0_15, %c0_16, %c0_17], %35 {strides = array<i32>} : memref<1x16x768xbf16, #tpu.memory_space<vmem>>, vector<1x16x768xbf16>,
    return
  }
  func.func @transform_0(%arg0: i32, %arg1: i32) -> (i32, i32, i32) {
    %c0_i32 = arith.constant 0 : i32
    %c0_i32_0 = arith.constant 0 : i32
    return %arg0, %arg1, %c0_i32 : i32, i32, i32
  }
  func.func @transform_1(%arg0: i32, %arg1: i32) -> (i32, i32) {
    %c0_i32 = arith.constant 0 : i32
    %c0_i32_0 = arith.constant 0 : i32
    %c0_i32_1 = arith.constant 0 : i32
    return %c0_i32, %c0_i32_0 : i32, i32
  }
  func.func @transform_2(%arg0: i32, %arg1: i32) -> (i32, i32) {
    %c0_i32 = arith.constant 0 : i32
    %c0_i32_0 = arith.constant 0 : i32
    %c0_i32_1 = arith.constant 0 : i32
    return %c0_i32, %c0_i32_0 : i32, i32
  }
  func.func @transform_3(%arg0: i32, %arg1: i32) -> (i32, i32) {
    %c0_i32 = arith.constant 0 : i32
    %c0_i32_0 = arith.constant 0 : i32
    %c0_i32_1 = arith.constant 0 : i32
    return %c0_i32, %c0_i32_0 : i32, i32
  }
  func.func @transform_4(%arg0: i32, %arg1: i32) -> (i32, i32) {
    %c0_i32 = arith.constant 0 : i32
    %c0_i32_0 = arith.constant 0 : i32
    %c0_i32_1 = arith.constant 0 : i32
    return %c0_i32, %c0_i32_0 : i32, i32
  }
  func.func @transform_5(%arg0: i32, %arg1: i32) -> (i32, i32, i32) {
    %c0_i32 = arith.constant 0 : i32
    %c0_i32_0 = arith.constant 0 : i32
    return %arg0, %arg1, %c0_i32 : i32, i32, i32
  }
}

</mosaic_0001>

<llo_original>
// kernel: tpu_custom_call.1
$region0: #{tpu_custom_call.1}
  #allocation0 [shape = 'u32[]', space=smem, size = 0x4, offset = 0x4, fixed_abs, tag = 'smem constant byte address 0x4 - core index']
  #allocation1 [shape = 'u32[144,128]{1,0:T(1,128)}', space=vmem, size = 0x12000, scoped, tag = 'internal scratch']
  %s0 = inlined_call_operand.hbm [shape: f32[2,16,256], index: 0, kind: input, shape index: {}]
  %s1 = inlined_call_operand.hbm [shape: f32[1,256], index: 1, kind: input, shape index: {}]
  %s2 = inlined_call_operand.hbm [shape: f32[1,256], index: 2, kind: input, shape index: {}]
  %s3 = inlined_call_operand.hbm [shape: bf16[256,768], index: 3, kind: input, shape index: {}]
  %s4 = inlined_call_operand.vmem [shape: f32[1,768], index: 4, kind: input, shape index: {}]
  %s5 = inlined_call_operand.hbm [shape: bf16[2,16,768], index: 5, kind: output, shape index: {}]
  %s6 = sld [smem:[#allocation0]]
  $region69: #{tpu_custom_call.1} parent=0
    _
  %s8 = ssub.s32 1, %s6
  %s9 = scalar_select 0, %s8, %s6
  $region1: #{tpu_custom_call.1} parent=0
    #allocation2 [shape = 'u8[32768]{0}', space=vmem, size = 0x8000, scoped, tag = 'input window, operand 0']
    #allocation3 [shape = 's32[2]{0}', space=sflag, size = 0x8, scoped, tag = 'scoped memory for tpu_custom_call.1']
    #allocation4 [shape = 's32[2]{0}', space=sflag, size = 0x8, scoped, tag = 'scoped memory for tpu_custom_call.1']
    #allocation5 [shape = 'u8[1024]{0}', space=vmem, size = 0x400, scoped, tag = 'input window, operand 1, single buffered']
    #allocation6 [shape = 's32[1]{0}', space=sflag, size = 0x4, scoped, tag = 'scoped memory for tpu_custom_call.1']
    #allocation7 [shape = 'u8[1024]{0}', space=vmem, size = 0x400, scoped, tag = 'input window, operand 2, single buffered']
    #allocation8 [shape = 'u8[393216]{0}', space=vmem, size = 0x60000, scoped, tag = 'input window, operand 3, single buffered']
    #allocation9 [shape = 's32[1]{0}', space=sflag, size = 0x4, scoped, tag = 'scoped memory for tpu_custom_call.1']
    #allocation10 [shape = 'u8[49152]{0}', space=vmem, size = 0xc000, scoped, tag = 'output window, operand 0']
    %10 = vsyncpa [#allocation3], 0
    %s11 = scalar_lea.sflag [#allocation3], 1
    %12 = vsyncpa %s11, 0
    %13 = vsyncpa [#allocation6], 0
    %14 = vsyncpa [#allocation9], 0
    %15 = vsyncpa [#allocation4], 0
    %s16 = scalar_lea.sflag [#allocation4], 1
    %17 = vsyncpa %s16, 0
    loop: start=0, step=1, limit=4
    $region2: #{tpu_custom_call.1} parent=1 // loop_pre_header
      _
    $region3: #{tpu_custom_call.1} parent=1 // loop_header
      %s19 = sphi 0, %s23
      %p20 = scmp.ge.s32.totalorder %s19, 4
      %s26 = sphi 0, %s38
      %s27 = sphi 0, %s34
      %s28 = sphi 0, %s26
      %s29 = sphi 0, %s27
      %s30 = sphi 0, %s28
      %s31 = sphi 0, %s29
      %s43 = sphi 0, %s45
      %s46 = sphi 0, %s43
      %s47 = sphi 0, %s46
      %s63 = sphi 0, %s47
      %s67 = sphi 0, %s67
      %s69 = sphi 0, %s67
      %s70 = sphi 0, %s69
      %s84 = sphi 0, %s70
      %s88 = sphi 0, %s88
      %s90 = sphi 0, %s88
      %s91 = sphi 0, %s90
      %s105 = sphi 0, %s91
      %s109 = sphi 0, %s109
      %s111 = sphi 0, %s109
      %s112 = sphi 0, %s111
      %s126 = sphi 0, %s112
      %s130 = sphi 0, %s130
      %s132 = sphi 0, %s130
      %s133 = sphi 0, %s132
      %s147 = sphi 0, %s133
      %s155 = sphi 0, %s157
      %s158 = sphi 0, %s155
      %s159 = sphi 0, %s158
      %s175 = sphi 0, %s159
    $region4: #{tpu_custom_call.1} parent=1 // loop_header_branch
      %22 = sbr.rel (%p20) target = $region8
    $region5: #{tpu_custom_call.1} parent=1 // loop_body
      %s24 = ssub.s32 %s19, 1
      %s25 = ssub.s32 %s19, 2
      %s32 = sadd.s32 1, %s27
      %p33 = scmp.ge.s32.totalorder %s32, 1
      %s34 = scalar_select %p33, 0, %s32
      %s35 = sadd.s32 1, %s26
      %s36 = scalar_select %p33, %s35, %s26
      %p37 = scmp.ge.s32.totalorder %s36, 2
      %s38 = scalar_select %p37, 0, %s36
      %s39 = ssub.s32 %s26, %s38
      %s40 = ssub.s32 %s27, %s34
      %s41 = sor.u32 %s39, %s40
      %p42 = scmp.eq.s32.totalorder %s41, 0
      %s44 = sadd.s32 %s43, 1
      %s45 = scalar_select %p42, %s43, %s44
      %p48 = pneg %p42
      %p49 = scmp.eq.s32.totalorder %s19, 1
      %p50 = por %p48, %p49
      %p51 = scmp.ne.s32.totalorder %s43, %s46
      %p52 = scmp.eq.s32.totalorder %s19, 0
      %p53 = por %p51, %p52
      %p54 = scmp.ne.s32.totalorder %s43, %s46
      %p55 = scmp.eq.s32.totalorder %s24, 1
      %p56 = por %p54, %p55
      %p57 = scmp.ne.s32.totalorder %s46, %s47
      %p58 = scmp.eq.s32.totalorder %s24, 0
      %p59 = por %p57, %p58
      %p60 = scmp.ne.s32.totalorder %s46, %s47
      %p61 = scmp.eq.s32.totalorder %s25, 1
      %p62 = por %p60, %p61
      %p64 = scmp.ne.s32.totalorder %s47, %s63
      %p65 = scmp.eq.s32.totalorder %s25, 0
      %p66 = por %p64, %p65
      %s68 = sadd.s32 %s67, 1
      %p71 = scmp.eq.s32.totalorder %s19, 1
      %p72 = scmp.ne.s32.totalorder %s67, %s69
      %p73 = scmp.eq.s32.totalorder %s19, 0
      %p74 = por %p72, %p73
      %p75 = scmp.ne.s32.totalorder %s67, %s69
      %p76 = scmp.eq.s32.totalorder %s24, 1
      %p77 = por %p75, %p76
      %p78 = scmp.ne.s32.totalorder %s69, %s70
      %p79 = scmp.eq.s32.totalorder %s24, 0
      %p80 = por %p78, %p79
      %p81 = scmp.ne.s32.totalorder %s69, %s70
      %p82 = scmp.eq.s32.totalorder %s25, 1
      %p83 = por %p81, %p82
      %p85 = scmp.ne.s32.totalorder %s70, %s84
      %p86 = scmp.eq.s32.totalorder %s25, 0
      %p87 = por %p85, %p86
      %s89 = sadd.s32 %s88, 1
      %p92 = scmp.eq.s32.totalorder %s19, 1
      %p93 = scmp.ne.s32.totalorder %s88, %s90
      %p94 = scmp.eq.s32.totalorder %s19, 0
      %p95 = por %p93, %p94
      %p96 = scmp.ne.s32.totalorder %s88, %s90
      %p97 = scmp.eq.s32.totalorder %s24, 1
      %p98 = por %p96, %p97
      %p99 = scmp.ne.s32.totalorder %s90, %s91
      %p100 = scmp.eq.s32.totalorder %s24, 0
      %p101 = por %p99, %p100
      %p102 = scmp.ne.s32.totalorder %s90, %s91
      %p103 = scmp.eq.s32.totalorder %s25, 1
      %p104 = por %p102, %p103
      %p106 = scmp.ne.s32.totalorder %s91, %s105
      %p107 = scmp.eq.s32.totalorder %s25, 0
      %p108 = por %p106, %p107
      %s110 = sadd.s32 %s109, 1
      %p113 = scmp.eq.s32.totalorder %s19, 1
      %p114 = scmp.ne.s32.totalorder %s109, %s111
      %p115 = scmp.eq.s32.totalorder %s19, 0
      %p116 = por %p114, %p115
      %p117 = scmp.ne.s32.totalorder %s109, %s111
      %p118 = scmp.eq.s32.totalorder %s24, 1
      %p119 = por %p117, %p118
      %p120 = scmp.ne.s32.totalorder %s111, %s112
      %p121 = scmp.eq.s32.totalorder %s24, 0
      %p122 = por %p120, %p121
      %p123 = scmp.ne.s32.totalorder %s111, %s112
      %p124 = scmp.eq.s32.totalorder %s25, 1
      %p125 = por %p123, %p124
      %p127 = scmp.ne.s32.totalorder %s112, %s126
      %p128 = scmp.eq.s32.totalorder %s25, 0
      %p129 = por %p127, %p128
      %s131 = sadd.s32 %s130, 1
      %p134 = scmp.eq.s32.totalorder %s19, 1
      %p135 = scmp.ne.s32.totalorder %s130, %s132
      %p136 = scmp.eq.s32.totalorder %s19, 0
      %p137 = por %p135, %p136
      %p138 = scmp.ne.s32.totalorder %s130, %s132
      %p139 = scmp.eq.s32.totalorder %s24, 1
      %p140 = por %p138, %p139
      %p141 = scmp.ne.s32.totalorder %s132, %s133
      %p142 = scmp.eq.s32.totalorder %s24, 0
      %p143 = por %p141, %p142
      %p144 = scmp.ne.s32.totalorder %s132, %s133
      %p145 = scmp.eq.s32.totalorder %s25, 1
      %p146 = por %p144, %p145
      %p148 = scmp.ne.s32.totalorder %s133, %s147
      %p149 = scmp.eq.s32.totalorder %s25, 0
      %p150 = por %p148, %p149
      %s151 = ssub.s32 %s26, %s38
      %s152 = ssub.s32 %s27, %s34
      %s153 = sor.u32 %s151, %s152
      %p154 = scmp.eq.s32.totalorder %s153, 0
      %s156 = sadd.s32 %s155, 1
      %s157 = scalar_select %p154, %s155, %s156
      %p160 = pneg %p154
      %p161 = scmp.eq.s32.totalorder %s19, 1
      %p162 = por %p160, %p161
      %p163 = scmp.ne.s32.totalorder %s155, %s158
      %p164 = scmp.eq.s32.totalorder %s19, 0
      %p165 = por %p163, %p164
      %p166 = scmp.ne.s32.totalorder %s155, %s158
      %p167 = scmp.eq.s32.totalorder %s24, 1
      %p168 = por %p166, %p167
      %p169 = scmp.ne.s32.totalorder %s158, %s159
      %p170 = scmp.eq.s32.totalorder %s24, 0
      %p171 = por %p169, %p170
      %p172 = scmp.ne.s32.totalorder %s158, %s159
      %p173 = scmp.eq.s32.totalorder %s25, 1
      %p174 = por %p172, %p173
      %p176 = scmp.ne.s32.totalorder %s159, %s175
      %p177 = scmp.eq.s32.totalorder %s25, 0
      %p178 = por %p176, %p177
      %p179 = scmp.le.s32.totalorder 1, %s19
      %p180 = scmp.lt.s32.totalorder %s19, 3
      %p181 = pnand %p179, %p180
      %p182 = pneg %p181
      // Predicated region
      $region9: #{tpu_custom_call.1} parent=5 // pred_check
        _
      $region10: #{tpu_custom_call.1} parent=5 // pred_check_branch
        %184 = sbr.rel (%p181) target = $region12
      $region11: #{tpu_custom_call.1} parent=5 // pred_region
        %s185 = ssub.s32 %s19, 1
        // Predicated region
        $region13: #{tpu_custom_call.1} parent=11 // pred_check
          %p186 = pneg %p80
        $region14: #{tpu_custom_call.1} parent=11 // pred_check_branch
          %188 = sbr.rel (%p186) target = $region16
        $region15: #{tpu_custom_call.1} parent=11 // pred_region
          %s190 = ssub.s32 32, 32
          %191 = vsyncadd [#allocation6], %s190
          %s193 = sshll.u32 [#allocation5], 4
          %s194 = int_to_ptr.vmem [resolvable:$true] %s193
          %196 = dma.hbm_to_vmem [thread:$0]  %s1, 32, %s194, [#allocation6]
        $region16: #{tpu_custom_call.1} parent=11 // pred_fallthru
          _
        // Predicated region
        $region17: #{tpu_custom_call.1} parent=11 // pred_check
          %p197 = pneg %p101
        $region18: #{tpu_custom_call.1} parent=11 // pred_check_branch
          %199 = sbr.rel (%p197) target = $region20
        $region19: #{tpu_custom_call.1} parent=11 // pred_region
          %s201 = ssub.s32 32, 32
          %202 = vsyncadd [#allocation6], %s201
          %s204 = sshll.u32 [#allocation7], 4
          %s205 = int_to_ptr.vmem [resolvable:$true] %s204
          %207 = dma.hbm_to_vmem [thread:$0]  %s2, 32, %s205, [#allocation6]
        $region20: #{tpu_custom_call.1} parent=11 // pred_fallthru
          _
        // Predicated region
        $region21: #{tpu_custom_call.1} parent=11 // pred_check
          %p208 = pneg %p122
        $region22: #{tpu_custom_call.1} parent=11 // pred_check_branch
          %210 = sbr.rel (%p208) target = $region24
        $region23: #{tpu_custom_call.1} parent=11 // pred_region
          %s212 = ssub.s32 12288, 12288
          %213 = vsyncadd [#allocation9], %s212
          %s214 = sshll.u32 [#allocation8], 4
          %s215 = int_to_ptr.vmem [resolvable:$true] %s214
          %220 = dma.hbm_to_vmem [thread:$0]  %s3, 12288, %s215, [#allocation9], 384, 384, 24
        $region24: #{tpu_custom_call.1} parent=11 // pred_fallthru
          _
        // Predicated region
        $region25: #{tpu_custom_call.1} parent=11 // pred_check
          %p221 = pneg %p143
        $region26: #{tpu_custom_call.1} parent=11 // pred_check_branch
          %223 = sbr.rel (%p221) target = $region28
        $region27: #{tpu_custom_call.1} parent=11 // pred_region
          _
        $region28: #{tpu_custom_call.1} parent=11 // pred_fallthru
          _
      $region12: #{tpu_custom_call.1} parent=5 // pred_fallthru
        _
      %p224 = scmp.lt.s32.totalorder %s19, 2
      // Predicated region
      $region29: #{tpu_custom_call.1} parent=5 // pred_check
        %p225 = pneg %p224
      $region30: #{tpu_custom_call.1} parent=5 // pred_check_branch
        %227 = sbr.rel (%p225) target = $region32
      $region31: #{tpu_custom_call.1} parent=5 // pred_region
        // Predicated region
        $region33: #{tpu_custom_call.1} parent=31 // pred_check
          %p228 = pneg %p53
        $region34: #{tpu_custom_call.1} parent=31 // pred_check_branch
          %230 = sbr.rel (%p228) target = $region36
        $region35: #{tpu_custom_call.1} parent=31 // pred_region
          %s231 = sand.u32 %s43, 1
          %s232 = scalar_lea.sflag [#allocation3], %s231
          %s233 = sand.u32 %s43, 1
          %s234 = smul.addr %s233, 32
          %s235 = scalar_lea.vmem [#allocation2], %s234
          %s236 = smul.u32 2, %s27
          %s238 = ssub.s32 512, 512
          %239 = vsyncadd %s232, %s238
          %s240 = smul.addr %s236, 2
          %s241 = smul.addr %s26, 4
          %s242 = sadd.s32 %s240, %s241
          %s243 = smul.addr %s242, 128
          %s244 = scalar_lea.hbm %s0, %s243
          %s245 = sshll.u32 %s235, 4
          %s246 = int_to_ptr.vmem [resolvable:$true] %s245
          %251 = dma.hbm_to_vmem [thread:$0]  %s244, 512, %s246, %s232, 256, 256, 16
        $region36: #{tpu_custom_call.1} parent=31 // pred_fallthru
          _
      $region32: #{tpu_custom_call.1} parent=5 // pred_fallthru
        _
      %p252 = scmp.le.s32.totalorder 1, %s19
      %p253 = scmp.lt.s32.totalorder %s19, 3
      %p254 = pnand %p252, %p253
      %p255 = pneg %p254
      // Predicated region
      $region37: #{tpu_custom_call.1} parent=5 // pred_check
        _
      $region38: #{tpu_custom_call.1} parent=5 // pred_check_branch
        %257 = sbr.rel (%p254) target = $region40
      $region39: #{tpu_custom_call.1} parent=5 // pred_region
        %s258 = ssub.s32 %s19, 1
        %s259 = sand.u32 %s46, 1
        %s260 = scalar_lea.sflag [#allocation3], %s259
        %s261 = sand.u32 %s46, 1
        %s262 = smul.addr %s261, 32
        %s263 = scalar_lea.vmem [#allocation2], %s262
        // Predicated region
        $region41: #{tpu_custom_call.1} parent=39 // pred_check
          %p264 = pneg %p59
        $region42: #{tpu_custom_call.1} parent=39 // pred_check_branch
          %266 = sbr.rel (%p264) target = $region44
        $region43: #{tpu_custom_call.1} parent=39 // pred_region
          %267 = dma.done %s260, 512
        $region44: #{tpu_custom_call.1} parent=39 // pred_fallthru
          _
        // Predicated region
        $region45: #{tpu_custom_call.1} parent=39 // pred_check
          %p268 = pneg %p80
        $region46: #{tpu_custom_call.1} parent=39 // pred_check_branch
          %270 = sbr.rel (%p268) target = $region48
        $region47: #{tpu_custom_call.1} parent=39 // pred_region
          %271 = dma.done [#allocation6], 32
        $region48: #{tpu_custom_call.1} parent=39 // pred_fallthru
          _
        // Predicated region
        $region49: #{tpu_custom_call.1} parent=39 // pred_check
          %p272 = pneg %p101
        $region50: #{tpu_custom_call.1} parent=39 // pred_check_branch
          %274 = sbr.rel (%p272) target = $region52
        $region51: #{tpu_custom_call.1} parent=39 // pred_region
          %275 = dma.done [#allocation6], 32
        $region52: #{tpu_custom_call.1} parent=39 // pred_fallthru
          _
        // Predicated region
        $region53: #{tpu_custom_call.1} parent=39 // pred_check
          %p276 = pneg %p122
        $region54: #{tpu_custom_call.1} parent=39 // pred_check_branch
          %278 = sbr.rel (%p276) target = $region56
        $region55: #{tpu_custom_call.1} parent=39 // pred_region
          %279 = dma.done [#allocation9], 12288
        $region56: #{tpu_custom_call.1} parent=39 // pred_fallthru
          _
        %s280 = sand.u32 %s46, 1
        %s281 = scalar_lea.sflag [#allocation3], %s280
        %s282 = sand.u32 %s46, 1
        %s283 = smul.addr %s282, 32
        %s284 = scalar_lea.vmem [#allocation2], %s283
        %p285 = pneg %p59
        %p286 = pneg %p56
        %p287 = pneg %p80
        %p288 = pneg %p77
        %p289 = pneg %p101
        %p290 = pneg %p98
        %p291 = pneg %p122
        %p292 = pneg %p119
        %p293 = pneg %p143
        %p294 = pneg %p140
        %p295 = pneg %p171
        %p296 = pneg %p168
        %s297 = sand.u32 %s158, 1
        %s298 = scalar_lea.sflag [#allocation4], %s297
        %s299 = sand.u32 %s158, 1
        %s300 = smul.addr %s299, 48
        %s301 = scalar_lea.vmem [#allocation10], %s300
        %s302 = smul.u32 2, %s29
        %s303 = smul.u32 2, %s29
        %v304 = vld [vmem:[%s263] sm:$0xff]
        %v305 = vld [vmem:[%s263 + $0x8] sm:$0xff]
        %v306 = vld [vmem:[%s263 + $0x10] sm:$0xff]
        %v307 = vld [vmem:[%s263 + $0x18] sm:$0xff]
        %v308 = vadd.f32 %v304, %v305
        %309 = vadd.xlane.f32.xlu0 %v308
        %v310 = vpop.xlane.xlu0 %309
        %v311 = vadd.f32 %v306, %v307
        %312 = vadd.xlane.f32.xlu0 %v311
        %v313 = vpop.xlane.xlu0 %312
        %v314 = vrcp.pop 256.0
        %v315 = vmul.f32 %v310, %v314
        %v316 = vmul.f32 %v313, %v314
        %v317 = vsub.f32 %v304, %v315
        %v318 = vsub.f32 %v305, %v315
        %v319 = vsub.f32 %v306, %v316
        %v320 = vsub.f32 %v307, %v316
        %v321 = vmul.f32 %v317, %v317
        %v322 = vmul.f32 %v318, %v318
        %v323 = vmul.f32 %v319, %v319
        %v324 = vmul.f32 %v320, %v320
        %v325 = vadd.f32 %v321, %v322
        %326 = vadd.xlane.f32.xlu0 %v325
        %v327 = vpop.xlane.xlu0 %326
        %v328 = vadd.f32 %v323, %v324
        %329 = vadd.xlane.f32.xlu0 %v328
        %v330 = vpop.xlane.xlu0 %329
        %v331 = vmul.f32 %v327, %v314
        %v332 = vmul.f32 %v330, %v314
        %v333 = vadd.f32 %v331, 1e-05
        %v334 = vadd.f32 %v332, 1e-05
        %v335 = vrsqrt.pop %v333
        %v336 = vrsqrt.pop %v334
        %v337 = vmul.f32 %v317, %v335
        %v338 = vmul.f32 %v318, %v335
        %v339 = vmul.f32 %v319, %v336
        %v340 = vmul.f32 %v320, %v336
        %v341 = vld [vmem:[#allocation5] sm:$0x3]
        %v343 = vlaneseq
        %v344 = vshrl.u32 %v343, 7
        %v345 = vsub.s32 0, %v344
        %v346 = vrot.slane %v341, %v345
        %v347 = vlaneseq
        %v348 = vshrl.u32 %v347, 7
        %v349 = vsub.s32 1, %v348
        %v350 = vrot.slane %v341, %v349
        %v353 = vmul.f32 %v337, %v346
        %v354 = vmul.f32 %v338, %v350
        %v355 = vmul.f32 %v339, %v346
        %v356 = vmul.f32 %v340, %v350
        %v357 = vld [vmem:[#allocation7] sm:$0x3]
        %v359 = vlaneseq
        %v360 = vshrl.u32 %v359, 7
        %v361 = vsub.s32 0, %v360
        %v362 = vrot.slane %v357, %v361
        %v363 = vlaneseq
        %v364 = vshrl.u32 %v363, 7
        %v365 = vsub.s32 1, %v364
        %v366 = vrot.slane %v357, %v365
        %v369 = vadd.f32 %v353, %v362
        %v370 = vadd.f32 %v354, %v366
        %v371 = vadd.f32 %v355, %v362
        %v372 = vadd.f32 %v356, %v366
        %v373 = vpack.c.bf16 %v371, %v369
        %v374 = vpack.c.bf16 %v372, %v370
        %v375 = vld [vmem:[#allocation8] sm:$0xff]
        %v376 = vld [vmem:[#allocation8 + $0x8] sm:$0xff]
        %v377 = vld [vmem:[#allocation8 + $0x10] sm:$0xff]
        %v378 = vld [vmem:[#allocation8 + $0x18] sm:$0xff]
        %v379 = vld [vmem:[#allocation8 + $0x20] sm:$0xff]
        %v380 = vld [vmem:[#allocation8 + $0x28] sm:$0xff]
        %v381 = vld [vmem:[#allocation8 + $0x30] sm:$0xff]
        %v382 = vld [vmem:[#allocation8 + $0x38] sm:$0xff]
        %v383 = vld [vmem:[#allocation8 + $0x40] sm:$0xff]
        %v384 = vld [vmem:[#allocation8 + $0x48] sm:$0xff]
        %v385 = vld [vmem:[#allocation8 + $0x50] sm:$0xff]
        %v386 = vld [vmem:[#allocation8 + $0x58] sm:$0xff]
        %v387 = vld [vmem:[#allocation8 + $0x60] sm:$0xff]
        %v388 = vld [vmem:[#allocation8 + $0x68] sm:$0xff]
        %v389 = vld [vmem:[#allocation8 + $0x70] sm:$0xff]
        %v390 = vld [vmem:[#allocation8 + $0x78] sm:$0xff]
        %v391 = vld [vmem:[#allocation8 + $0x80] sm:$0xff]
        %v392 = vld [vmem:[#allocation8 + $0x88] sm:$0xff]
        %v393 = vld [vmem:[#allocation8 + $0x90] sm:$0xff]
        %v394 = vld [vmem:[#allocation8 + $0x98] sm:$0xff]
        %v395 = vld [vmem:[#allocation8 + $0xa0] sm:$0xff]
        %v396 = vld [vmem:[#allocation8 + $0xa8] sm:$0xff]
        %v397 = vld [vmem:[#allocation8 + $0xb0] sm:$0xff]
        %v398 = vld [vmem:[#allocation8 + $0xb8] sm:$0xff]
        %v399 = vld [vmem:[#allocation8 + $0xc0] sm:$0xff]
        %v400 = vld [vmem:[#allocation8 + $0xc8] sm:$0xff]
        %v401 = vld [vmem:[#allocation8 + $0xd0] sm:$0xff]
        %v402 = vld [vmem:[#allocation8 + $0xd8] sm:$0xff]
        %v403 = vld [vmem:[#allocation8 + $0xe0] sm:$0xff]
        %v404 = vld [vmem:[#allocation8 + $0xe8] sm:$0xff]
        %v405 = vld [vmem:[#allocation8 + $0xf0] sm:$0xff]
        %v406 = vld [vmem:[#allocation8 + $0xf8] sm:$0xff]
        %v407 = vld [vmem:[#allocation8 + $0x100] sm:$0xff]
        %v408 = vld [vmem:[#allocation8 + $0x108] sm:$0xff]
        %v409 = vld [vmem:[#allocation8 + $0x110] sm:$0xff]
        %v410 = vld [vmem:[#allocation8 + $0x118] sm:$0xff]
        %v411 = vld [vmem:[#allocation8 + $0x120] sm:$0xff]
        %v412 = vld [vmem:[#allocation8 + $0x128] sm:$0xff]
        %v413 = vld [vmem:[#allocation8 + $0x130] sm:$0xff]
        %v414 = vld [vmem:[#allocation8 + $0x138] sm:$0xff]
        %v415 = vld [vmem:[#allocation8 + $0x140] sm:$0xff]
        %v416 = vld [vmem:[#allocation8 + $0x148] sm:$0xff]
        %v417 = vld [vmem:[#allocation8 + $0x150] sm:$0xff]
        %v418 = vld [vmem:[#allocation8 + $0x158] sm:$0xff]
        %v419 = vld [vmem:[#allocation8 + $0x160] sm:$0xff]
        %v420 = vld [vmem:[#allocation8 + $0x168] sm:$0xff]
        %v421 = vld [vmem:[#allocation8 + $0x170] sm:$0xff]
        %v422 = vld [vmem:[#allocation8 + $0x178] sm:$0xff]
        %v423 = vld [vmem:[#allocation8 + $0x180] sm:$0xff]
        %v424 = vld [vmem:[#allocation8 + $0x188] sm:$0xff]
        %v425 = vld [vmem:[#allocation8 + $0x190] sm:$0xff]
        %v426 = vld [vmem:[#allocation8 + $0x198] sm:$0xff]
        %v427 = vld [vmem:[#allocation8 + $0x1a0] sm:$0xff]
        %v428 = vld [vmem:[#allocation8 + $0x1a8] sm:$0xff]
        %v429 = vld [vmem:[#allocation8 + $0x1b0] sm:$0xff]
        %v430 = vld [vmem:[#allocation8 + $0x1b8] sm:$0xff]
        %v431 = vld [vmem:[#allocation8 + $0x1c0] sm:$0xff]
        %v432 = vld [vmem:[#allocation8 + $0x1c8] sm:$0xff]
        %v433 = vld [vmem:[#allocation8 + $0x1d0] sm:$0xff]
        %v434 = vld [vmem:[#allocation8 + $0x1d8] sm:$0xff]
        %v435 = vld [vmem:[#allocation8 + $0x1e0] sm:$0xff]
        %v436 = vld [vmem:[#allocation8 + $0x1e8] sm:$0xff]
        %v437 = vld [vmem:[#allocation8 + $0x1f0] sm:$0xff]
        %v438 = vld [vmem:[#allocation8 + $0x1f8] sm:$0xff]
        %v439 = vld [vmem:[#allocation8 + $0x200] sm:$0xff]
        %v440 = vld [vmem:[#allocation8 + $0x208] sm:$0xff]
        %v441 = vld [vmem:[#allocation8 + $0x210] sm:$0xff]
        %v442 = vld [vmem:[#allocation8 + $0x218] sm:$0xff]
        %v443 = vld [vmem:[#allocation8 + $0x220] sm:$0xff]
        %v444 = vld [vmem:[#allocation8 + $0x228] sm:$0xff]
        %v445 = vld [vmem:[#allocation8 + $0x230] sm:$0xff]
        %v446 = vld [vmem:[#allocation8 + $0x238] sm:$0xff]
        %v447 = vld [vmem:[#allocation8 + $0x240] sm:$0xff]
        %v448 = vld [vmem:[#allocation8 + $0x248] sm:$0xff]
        %v449 = vld [vmem:[#allocation8 + $0x250] sm:$0xff]
        %v450 = vld [vmem:[#allocation8 + $0x258] sm:$0xff]
        %v451 = vld [vmem:[#allocation8 + $0x260] sm:$0xff]
        %v452 = vld [vmem:[#allocation8 + $0x268] sm:$0xff]
        %v453 = vld [vmem:[#allocation8 + $0x270] sm:$0xff]
        %v454 = vld [vmem:[#allocation8 + $0x278] sm:$0xff]
        %v455 = vld [vmem:[#allocation8 + $0x280] sm:$0xff]
        %v456 = vld [vmem:[#allocation8 + $0x288] sm:$0xff]
        %v457 = vld [vmem:[#allocation8 + $0x290] sm:$0xff]
        %v458 = vld [vmem:[#allocation8 + $0x298] sm:$0xff]
        %v459 = vld [vmem:[#allocation8 + $0x2a0] sm:$0xff]
        %v460 = vld [vmem:[#allocation8 + $0x2a8] sm:$0xff]
        %v461 = vld [vmem:[#allocation8 + $0x2b0] sm:$0xff]
        %v462 = vld [vmem:[#allocation8 + $0x2b8] sm:$0xff]
        %v463 = vld [vmem:[#allocation8 + $0x2c0] sm:$0xff]
        %v464 = vld [vmem:[#allocation8 + $0x2c8] sm:$0xff]
        %v465 = vld [vmem:[#allocation8 + $0x2d0] sm:$0xff]
        %v466 = vld [vmem:[#allocation8 + $0x2d8] sm:$0xff]
        %v467 = vld [vmem:[#allocation8 + $0x2e0] sm:$0xff]
        %v468 = vld [vmem:[#allocation8 + $0x2e8] sm:$0xff]
        %v469 = vld [vmem:[#allocation8 + $0x2f0] sm:$0xff]
        %v470 = vld [vmem:[#allocation8 + $0x2f8] sm:$0xff]
        %v471 = vld [vmem:[%s4] sm:$0x3f]
        %v473 = vlaneseq
        %v474 = vshrl.u32 %v473, 7
        %v475 = vsub.s32 0, %v474
        %v476 = vrot.slane %v471, %v475
        %v477 = vlaneseq
        %v478 = vshrl.u32 %v477, 7
        %v479 = vsub.s32 1, %v478
        %v480 = vrot.slane %v471, %v479
        %v481 = vlaneseq
        %v482 = vshrl.u32 %v481, 7
        %v483 = vsub.s32 2, %v482
        %v484 = vrot.slane %v471, %v483
        %v485 = vlaneseq
        %v486 = vshrl.u32 %v485, 7
        %v487 = vsub.s32 3, %v486
        %v488 = vrot.slane %v471, %v487
        %v489 = vlaneseq
        %v490 = vshrl.u32 %v489, 7
        %v491 = vsub.s32 4, %v490
        %v492 = vrot.slane %v471, %v491
        %v493 = vlaneseq
        %v494 = vshrl.u32 %v493, 7
        %v495 = vsub.s32 5, %v494
        %v496 = vrot.slane %v471, %v495
        %v599 = vunpack.c.l.b16 %v375
        %v600 = vunpack.c.h.b16 %v375
        %v601 = vunpack.c.l.b16 %v376
        %v602 = vunpack.c.h.b16 %v376
        %v603 = vunpack.c.l.b16 %v377
        %v604 = vunpack.c.h.b16 %v377
        %v605 = vunpack.c.l.b16 %v378
        %v606 = vunpack.c.h.b16 %v378
        %v607 = vunpack.c.l.b16 %v379
        %v608 = vunpack.c.h.b16 %v379
        %v609 = vunpack.c.l.b16 %v380
        %v610 = vunpack.c.h.b16 %v380
        %v611 = vunpack.c.l.b16 %v381
        %v612 = vunpack.c.h.b16 %v381
        %v613 = vunpack.c.l.b16 %v382
        %v614 = vunpack.c.h.b16 %v382
        %v615 = vunpack.c.l.b16 %v383
        %v616 = vunpack.c.h.b16 %v383
        %v617 = vunpack.c.l.b16 %v384
        %v618 = vunpack.c.h.b16 %v384
        %v619 = vunpack.c.l.b16 %v385
        %v620 = vunpack.c.h.b16 %v385
        %v621 = vunpack.c.l.b16 %v386
        %v622 = vunpack.c.h.b16 %v386
        %v623 = vunpack.c.l.b16 %v387
        %v624 = vunpack.c.h.b16 %v387
        %v625 = vunpack.c.l.b16 %v388
        %v626 = vunpack.c.h.b16 %v388
        %v627 = vunpack.c.l.b16 %v389
        %v628 = vunpack.c.h.b16 %v389
        %v629 = vunpack.c.l.b16 %v390
        %v630 = vunpack.c.h.b16 %v390
        %v631 = vunpack.c.l.b16 %v391
        %v632 = vunpack.c.h.b16 %v391
        %v633 = vunpack.c.l.b16 %v392
        %v634 = vunpack.c.h.b16 %v392
        %v635 = vunpack.c.l.b16 %v393
        %v636 = vunpack.c.h.b16 %v393
        %v637 = vunpack.c.l.b16 %v394
        %v638 = vunpack.c.h.b16 %v394
        %v639 = vunpack.c.l.b16 %v395
        %v640 = vunpack.c.h.b16 %v395
        %v641 = vunpack.c.l.b16 %v396
        %v642 = vunpack.c.h.b16 %v396
        %v643 = vunpack.c.l.b16 %v397
        %v644 = vunpack.c.h.b16 %v397
        %v645 = vunpack.c.l.b16 %v398
        %v646 = vunpack.c.h.b16 %v398
        %v647 = vunpack.c.l.b16 %v399
        %v648 = vunpack.c.h.b16 %v399
        %v649 = vunpack.c.l.b16 %v400
        %v650 = vunpack.c.h.b16 %v400
        %v651 = vunpack.c.l.b16 %v401
        %v652 = vunpack.c.h.b16 %v401
        %v653 = vunpack.c.l.b16 %v402
        %v654 = vunpack.c.h.b16 %v402
        %v655 = vunpack.c.l.b16 %v403
        %v656 = vunpack.c.h.b16 %v403
        %v657 = vunpack.c.l.b16 %v404
        %v658 = vunpack.c.h.b16 %v404
        %v659 = vunpack.c.l.b16 %v405
        %v660 = vunpack.c.h.b16 %v405
        %v661 = vunpack.c.l.b16 %v406
        %v662 = vunpack.c.h.b16 %v406
        %v663 = vunpack.c.l.b16 %v407
        %v664 = vunpack.c.h.b16 %v407
        %v665 = vunpack.c.l.b16 %v408
        %v666 = vunpack.c.h.b16 %v408
        %v667 = vunpack.c.l.b16 %v409
        %v668 = vunpack.c.h.b16 %v409
        %v669 = vunpack.c.l.b16 %v410
        %v670 = vunpack.c.h.b16 %v410
        %v671 = vunpack.c.l.b16 %v411
        %v672 = vunpack.c.h.b16 %v411
        %v673 = vunpack.c.l.b16 %v412
        %v674 = vunpack.c.h.b16 %v412
        %v675 = vunpack.c.l.b16 %v413
        %v676 = vunpack.c.h.b16 %v413
        %v677 = vunpack.c.l.b16 %v414
        %v678 = vunpack.c.h.b16 %v414
        %v679 = vunpack.c.l.b16 %v415
        %v680 = vunpack.c.h.b16 %v415
        %v681 = vunpack.c.l.b16 %v416
        %v682 = vunpack.c.h.b16 %v416
        %v683 = vunpack.c.l.b16 %v417
        %v684 = vunpack.c.h.b16 %v417
        %v685 = vunpack.c.l.b16 %v418
        %v686 = vunpack.c.h.b16 %v418
        %v687 = vunpack.c.l.b16 %v419
        %v688 = vunpack.c.h.b16 %v419
        %v689 = vunpack.c.l.b16 %v420
        %v690 = vunpack.c.h.b16 %v420
        %v691 = vunpack.c.l.b16 %v421
        %v692 = vunpack.c.h.b16 %v421
        %v693 = vunpack.c.l.b16 %v422
        %v694 = vunpack.c.h.b16 %v422
        %v695 = vunpack.c.l.b16 %v423
        %v696 = vunpack.c.h.b16 %v423
        %v697 = vunpack.c.l.b16 %v424
        %v698 = vunpack.c.h.b16 %v424
        %v699 = vunpack.c.l.b16 %v425
        %v700 = vunpack.c.h.b16 %v425
        %v701 = vunpack.c.l.b16 %v426
        %v702 = vunpack.c.h.b16 %v426
        %v703 = vunpack.c.l.b16 %v427
        %v704 = vunpack.c.h.b16 %v427
        %v705 = vunpack.c.l.b16 %v428
        %v706 = vunpack.c.h.b16 %v428
        %v707 = vunpack.c.l.b16 %v429
        %v708 = vunpack.c.h.b16 %v429
        %v709 = vunpack.c.l.b16 %v430
        %v710 = vunpack.c.h.b16 %v430
        %v711 = vunpack.c.l.b16 %v431
        %v712 = vunpack.c.h.b16 %v431
        %v713 = vunpack.c.l.b16 %v432
        %v714 = vunpack.c.h.b16 %v432
        %v715 = vunpack.c.l.b16 %v433
        %v716 = vunpack.c.h.b16 %v433
        %v717 = vunpack.c.l.b16 %v434
        %v718 = vunpack.c.h.b16 %v434
        %v719 = vunpack.c.l.b16 %v435
        %v720 = vunpack.c.h.b16 %v435
        %v721 = vunpack.c.l.b16 %v436
        %v722 = vunpack.c.h.b16 %v436
        %v723 = vunpack.c.l.b16 %v437
        %v724 = vunpack.c.h.b16 %v437
        %v725 = vunpack.c.l.b16 %v438
        %v726 = vunpack.c.h.b16 %v438
        %v727 = vunpack.c.l.b16 %v439
        %v728 = vunpack.c.h.b16 %v439
        %v729 = vunpack.c.l.b16 %v440
        %v730 = vunpack.c.h.b16 %v440
        %v731 = vunpack.c.l.b16 %v441
        %v732 = vunpack.c.h.b16 %v441
        %v733 = vunpack.c.l.b16 %v442
        %v734 = vunpack.c.h.b16 %v442
        %v735 = vunpack.c.l.b16 %v443
        %v736 = vunpack.c.h.b16 %v443
        %v737 = vunpack.c.l.b16 %v444
        %v738 = vunpack.c.h.b16 %v444
        %v739 = vunpack.c.l.b16 %v445
        %v740 = vunpack.c.h.b16 %v445
        %v741 = vunpack.c.l.b16 %v446
        %v742 = vunpack.c.h.b16 %v446
        %v743 = vunpack.c.l.b16 %v447
        %v744 = vunpack.c.h.b16 %v447
        %v745 = vunpack.c.l.b16 %v448
        %v746 = vunpack.c.h.b16 %v448
        %v747 = vunpack.c.l.b16 %v449
        %v748 = vunpack.c.h.b16 %v449
        %v749 = vunpack.c.l.b16 %v450
        %v750 = vunpack.c.h.b16 %v450
        %v751 = vunpack.c.l.b16 %v451
        %v752 = vunpack.c.h.b16 %v451
        %v753 = vunpack.c.l.b16 %v452
        %v754 = vunpack.c.h.b16 %v452
        %v755 = vunpack.c.l.b16 %v453
        %v756 = vunpack.c.h.b16 %v453
        %v757 = vunpack.c.l.b16 %v454
        %v758 = vunpack.c.h.b16 %v454
        %v759 = vunpack.c.l.b16 %v455
        %v760 = vunpack.c.h.b16 %v455
        %v761 = vunpack.c.l.b16 %v456
        %v762 = vunpack.c.h.b16 %v456
        %v763 = vunpack.c.l.b16 %v457
        %v764 = vunpack.c.h.b16 %v457
        %v765 = vunpack.c.l.b16 %v458
        %v766 = vunpack.c.h.b16 %v458
        %v767 = vunpack.c.l.b16 %v459
        %v768 = vunpack.c.h.b16 %v459
        %v769 = vunpack.c.l.b16 %v460
        %v770 = vunpack.c.h.b16 %v460
        %v771 = vunpack.c.l.b16 %v461
        %v772 = vunpack.c.h.b16 %v461
        %v773 = vunpack.c.l.b16 %v462
        %v774 = vunpack.c.h.b16 %v462
        %v775 = vunpack.c.l.b16 %v463
        %v776 = vunpack.c.h.b16 %v463
        %v777 = vunpack.c.l.b16 %v464
        %v778 = vunpack.c.h.b16 %v464
        %v779 = vunpack.c.l.b16 %v465
        %v780 = vunpack.c.h.b16 %v465
        %v781 = vunpack.c.l.b16 %v466
        %v782 = vunpack.c.h.b16 %v466
        %v783 = vunpack.c.l.b16 %v467
        %v784 = vunpack.c.h.b16 %v467
        %v785 = vunpack.c.l.b16 %v468
        %v786 = vunpack.c.h.b16 %v468
        %v787 = vunpack.c.l.b16 %v469
        %v788 = vunpack.c.h.b16 %v469
        %v789 = vunpack.c.l.b16 %v470
        %v790 = vunpack.c.h.b16 %v470
        %v791 = vpack.c.b16 %v605, %v599
        %v792 = vpack.c.b16 %v606, %v600
        %v793 = vpack.c.b16 %v607, %v601
        %v794 = vpack.c.b16 %v608, %v602
        %v795 = vpack.c.b16 %v609, %v603
        %v796 = vpack.c.b16 %v610, %v604
        %v797 = vpack.c.b16 %v617, %v611
        %v798 = vpack.c.b16 %v618, %v612
        %v799 = vpack.c.b16 %v619, %v613
        %v800 = vpack.c.b16 %v620, %v614
        %v801 = vpack.c.b16 %v621, %v615
        %v802 = vpack.c.b16 %v622, %v616
        %v803 = vpack.c.b16 %v629, %v623
        %v804 = vpack.c.b16 %v630, %v624
        %v805 = vpack.c.b16 %v631, %v625
        %v806 = vpack.c.b16 %v632, %v626
        %v807 = vpack.c.b16 %v633, %v627
        %v808 = vpack.c.b16 %v634, %v628
        %v809 = vpack.c.b16 %v641, %v635
        %v810 = vpack.c.b16 %v642, %v636
        %v811 = vpack.c.b16 %v643, %v637
        %v812 = vpack.c.b16 %v644, %v638
        %v813 = vpack.c.b16 %v645, %v639
        %v814 = vpack.c.b16 %v646, %v640
        %v815 = vpack.c.b16 %v653, %v647
        %v816 = vpack.c.b16 %v654, %v648
        %v817 = vpack.c.b16 %v655, %v649
        %v818 = vpack.c.b16 %v656, %v650
        %v819 = vpack.c.b16 %v657, %v651
        %v820 = vpack.c.b16 %v658, %v652
        %v821 = vpack.c.b16 %v665, %v659
        %v822 = vpack.c.b16 %v666, %v660
        %v823 = vpack.c.b16 %v667, %v661
        %v824 = vpack.c.b16 %v668, %v662
        %v825 = vpack.c.b16 %v669, %v663
        %v826 = vpack.c.b16 %v670, %v664
        %v827 = vpack.c.b16 %v677, %v671
        %v828 = vpack.c.b16 %v678, %v672
        %v829 = vpack.c.b16 %v679, %v673
        %v830 = vpack.c.b16 %v680, %v674
        %v831 = vpack.c.b16 %v681, %v675
        %v832 = vpack.c.b16 %v682, %v676
        %v833 = vpack.c.b16 %v689, %v683
        %v834 = vpack.c.b16 %v690, %v684
        %v835 = vpack.c.b16 %v691, %v685
        %v836 = vpack.c.b16 %v692, %v686
        %v837 = vpack.c.b16 %v693, %v687
        %v838 = vpack.c.b16 %v694, %v688
        %v839 = vpack.c.b16 %v701, %v695
        %v840 = vpack.c.b16 %v702, %v696
        %v841 = vpack.c.b16 %v703, %v697
        %v842 = vpack.c.b16 %v704, %v698
        %v843 = vpack.c.b16 %v705, %v699
        %v844 = vpack.c.b16 %v706, %v700
        %v845 = vpack.c.b16 %v713, %v707
        %v846 = vpack.c.b16 %v714, %v708
        %v847 = vpack.c.b16 %v715, %v709
        %v848 = vpack.c.b16 %v716, %v710
        %v849 = vpack.c.b16 %v717, %v711
        %v850 = vpack.c.b16 %v718, %v712
        %v851 = vpack.c.b16 %v725, %v719
        %v852 = vpack.c.b16 %v726, %v720
        %v853 = vpack.c.b16 %v727, %v721
        %v854 = vpack.c.b16 %v728, %v722
        %v855 = vpack.c.b16 %v729, %v723
        %v856 = vpack.c.b16 %v730, %v724
        %v857 = vpack.c.b16 %v737, %v731
        %v858 = vpack.c.b16 %v738, %v732
        %v859 = vpack.c.b16 %v739, %v733
        %v860 = vpack.c.b16 %v740, %v734
        %v861 = vpack.c.b16 %v741, %v735
        %v862 = vpack.c.b16 %v742, %v736
        %v863 = vpack.c.b16 %v749, %v743
        %v864 = vpack.c.b16 %v750, %v744
        %v865 = vpack.c.b16 %v751, %v745
        %v866 = vpack.c.b16 %v752, %v746
        %v867 = vpack.c.b16 %v753, %v747
        %v868 = vpack.c.b16 %v754, %v748
        %v869 = vpack.c.b16 %v761, %v755
        %v870 = vpack.c.b16 %v762, %v756
        %v871 = vpack.c.b16 %v763, %v757
        %v872 = vpack.c.b16 %v764, %v758
        %v873 = vpack.c.b16 %v765, %v759
        %v874 = vpack.c.b16 %v766, %v760
        %v875 = vpack.c.b16 %v773, %v767
        %v876 = vpack.c.b16 %v774, %v768
        %v877 = vpack.c.b16 %v775, %v769
        %v878 = vpack.c.b16 %v776, %v770
        %v879 = vpack.c.b16 %v777, %v771
        %v880 = vpack.c.b16 %v778, %v772
        %v881 = vpack.c.b16 %v785, %v779
        %v882 = vpack.c.b16 %v786, %v780
        %v883 = vpack.c.b16 %v787, %v781
        %v884 = vpack.c.b16 %v788, %v782
        %v885 = vpack.c.b16 %v789, %v783
        %v886 = vpack.c.b16 %v790, %v784
        %983 = vmatprep.subr.bf16.mxu0 %v834
        %984 = vmatpush1.bf16.msra.mxu0 %v833
        %985 = vmatprep.subr.bf16.mxu0 %v828
        %986 = vmatpush1.bf16.msra.mxu0 %v827
        %987 = vmatprep.subr.bf16.mxu0 %v822
        %988 = vmatpush1.bf16.msra.mxu0 %v821
        %989 = vmatprep.subr.bf16.mxu0 %v816
        %990 = vmatpush1.bf16.msra.mxu0 %v815
        %991 = vmatprep.subr.bf16.mxu0 %v810
        %992 = vmatpush1.bf16.msra.mxu0 %v809
        %993 = vmatprep.subr.bf16.mxu0 %v804
        %994 = vmatpush1.bf16.msra.mxu0 %v803
        %995 = vmatprep.subr.bf16.mxu0 %v798
        %996 = vmatpush1.bf16.msra.mxu0 %v797
        %997 = vmatprep.subr.bf16.mxu0 %v792
        %998 = vmatpush1.bf16.msra.mxu0 %v791
        %999 = vmatprep.subr.bf16.mxu0 %v882
        %1000 = vmatpush2.bf16.msra.mxu0 %v881
        %1001 = vmatprep.subr.bf16.mxu0 %v876
        %1002 = vmatpush2.bf16.msra.mxu0 %v875
        %1003 = vmatprep.subr.bf16.mxu0 %v870
        %1004 = vmatpush2.bf16.msra.mxu0 %v869
        %1005 = vmatprep.subr.bf16.mxu0 %v864
        %1006 = vmatpush2.bf16.msra.mxu0 %v863
        %1007 = vmatprep.subr.bf16.mxu0 %v858
        %1008 = vmatpush2.bf16.msra.mxu0 %v857
        %1009 = vmatprep.subr.bf16.mxu0 %v852
        %1010 = vmatpush2.bf16.msra.mxu0 %v851
        %1011 = vmatprep.subr.bf16.mxu0 %v846
        %1012 = vmatpush2.bf16.msra.mxu0 %v845
        %1013 = vmatprep.subr.bf16.mxu0 %v840
        %1014 = vmatpush2.bf16.msra.mxu0 %v839
        %1015 = vmatprep.mubr.bf16.mxu0 %v374
        %1016 = vmatmul.mubr.bf16.gmra.mxu0 %v373
        %v1017 = vpop.f32.mrf.mxu0
        %v1018 = vadd.f32 %v476, %v1017
        %v1019 = vpop.f32.mrf.mxu0
        %v1020 = vadd.f32 %v480, %v1019
        %v1021 = vpop.f32.mrf.mxu0
        %v1022 = vadd.f32 %v476, %v1021
        %v1023 = vpop.f32.mrf.mxu0
        %v1024 = vadd.f32 %v480, %v1023
        %1025 = vdwg.mxu0
        %1026 = vmatprep.subr.bf16.mxu0 %v836
        %1027 = vmatpush1.bf16.msra.mxu0 %v835
        %1028 = vmatprep.subr.bf16.mxu0 %v830
        %1029 = vmatpush1.bf16.msra.mxu0 %v829
        %1030 = vmatprep.subr.bf16.mxu0 %v824
        %1031 = vmatpush1.bf16.msra.mxu0 %v823
        %1032 = vmatprep.subr.bf16.mxu0 %v818
        %1033 = vmatpush1.bf16.msra.mxu0 %v817
        %1034 = vmatprep.subr.bf16.mxu0 %v812
        %1035 = vmatpush1.bf16.msra.mxu0 %v811
        %1036 = vmatprep.subr.bf16.mxu0 %v806
        %1037 = vmatpush1.bf16.msra.mxu0 %v805
        %1038 = vmatprep.subr.bf16.mxu0 %v800
        %1039 = vmatpush1.bf16.msra.mxu0 %v799
        %1040 = vmatprep.subr.bf16.mxu0 %v794
        %1041 = vmatpush1.bf16.msra.mxu0 %v793
        %1042 = vmatprep.subr.bf16.mxu0 %v884
        %1043 = vmatpush2.bf16.msra.mxu0 %v883
        %1044 = vmatprep.subr.bf16.mxu0 %v878
        %1045 = vmatpush2.bf16.msra.mxu0 %v877
        %1046 = vmatprep.subr.bf16.mxu0 %v872
        %1047 = vmatpush2.bf16.msra.mxu0 %v871
        %1048 = vmatprep.subr.bf16.mxu0 %v866
        %1049 = vmatpush2.bf16.msra.mxu0 %v865
        %1050 = vmatprep.subr.bf16.mxu0 %v860
        %1051 = vmatpush2.bf16.msra.mxu0 %v859
        %1052 = vmatprep.subr.bf16.mxu0 %v854
        %1053 = vmatpush2.bf16.msra.mxu0 %v853
        %1054 = vmatprep.subr.bf16.mxu0 %v848
        %1055 = vmatpush2.bf16.msra.mxu0 %v847
        %1056 = vmatprep.subr.bf16.mxu0 %v842
        %1057 = vmatpush2.bf16.msra.mxu0 %v841
        %1058 = vmatprep.mubr.bf16.mxu0 %v374
        %1059 = vmatmul.mubr.bf16.gmra.mxu0 %v373
        %v1060 = vpop.f32.mrf.mxu0
        %v1061 = vadd.f32 %v484, %v1060
        %v1062 = vpop.f32.mrf.mxu0
        %v1063 = vadd.f32 %v488, %v1062
        %v1064 = vpop.f32.mrf.mxu0
        %v1065 = vadd.f32 %v484, %v1064
        %v1066 = vpop.f32.mrf.mxu0
        %v1067 = vadd.f32 %v488, %v1066
        %1068 = vdwg.mxu0
        %1069 = vmatprep.subr.bf16.mxu0 %v838
        %1070 = vmatpush1.bf16.msra.mxu0 %v837
        %1071 = vmatprep.subr.bf16.mxu0 %v832
        %1072 = vmatpush1.bf16.msra.mxu0 %v831
        %1073 = vmatprep.subr.bf16.mxu0 %v826
        %1074 = vmatpush1.bf16.msra.mxu0 %v825
        %1075 = vmatprep.subr.bf16.mxu0 %v820
        %1076 = vmatpush1.bf16.msra.mxu0 %v819
        %1077 = vmatprep.subr.bf16.mxu0 %v814
        %1078 = vmatpush1.bf16.msra.mxu0 %v813
        %1079 = vmatprep.subr.bf16.mxu0 %v808
        %1080 = vmatpush1.bf16.msra.mxu0 %v807
        %1081 = vmatprep.subr.bf16.mxu0 %v802
        %1082 = vmatpush1.bf16.msra.mxu0 %v801
        %1083 = vmatprep.subr.bf16.mxu0 %v796
        %1084 = vmatpush1.bf16.msra.mxu0 %v795
        %1085 = vmatprep.subr.bf16.mxu0 %v886
        %1086 = vmatpush2.bf16.msra.mxu0 %v885
        %1087 = vmatprep.subr.bf16.mxu0 %v880
        %1088 = vmatpush2.bf16.msra.mxu0 %v879
        %1089 = vmatprep.subr.bf16.mxu0 %v874
        %1090 = vmatpush2.bf16.msra.mxu0 %v873
        %1091 = vmatprep.subr.bf16.mxu0 %v868
        %1092 = vmatpush2.bf16.msra.mxu0 %v867
        %1093 = vmatprep.subr.bf16.mxu0 %v862
        %1094 = vmatpush2.bf16.msra.mxu0 %v861
        %1095 = vmatprep.subr.bf16.mxu0 %v856
        %1096 = vmatpush2.bf16.msra.mxu0 %v855
        %1097 = vmatprep.subr.bf16.mxu0 %v850
        %1098 = vmatpush2.bf16.msra.mxu0 %v849
        %1099 = vmatprep.subr.bf16.mxu0 %v844
        %1100 = vmatpush2.bf16.msra.mxu0 %v843
        %1101 = vmatprep.mubr.bf16.mxu0 %v374
        %1102 = vmatmul.mubr.bf16.gmra.mxu0 %v373
        %v1103 = vpop.f32.mrf.mxu0
        %v1104 = vadd.f32 %v492, %v1103
        %v1105 = vpop.f32.mrf.mxu0
        %v1106 = vadd.f32 %v496, %v1105
        %v1107 = vpop.f32.mrf.mxu0
        %v1108 = vadd.f32 %v492, %v1107
        %v1109 = vpop.f32.mrf.mxu0
        %v1110 = vadd.f32 %v496, %v1109
        %1111 = vdwg.mxu0
        %v1112 = vpack.c.bf16 %v1022, %v1018
        %v1113 = vpack.c.bf16 %v1024, %v1020
        %v1114 = vpack.c.bf16 %v1065, %v1061
        %v1115 = vpack.c.bf16 %v1067, %v1063
        %v1116 = vpack.c.bf16 %v1108, %v1104
        %v1117 = vpack.c.bf16 %v1110, %v1106
        %v1124 = vunpack.c.l.b16 %v1112
        %v1125 = vunpack.c.l.b16 %v1113
        %v1126 = vunpack.c.l.b16 %v1114
        %v1127 = vunpack.c.l.b16 %v1115
        %v1128 = vunpack.c.l.b16 %v1116
        %v1129 = vunpack.c.l.b16 %v1117
        %v1130 = vunpack.c.h.b16 %v1112
        %v1131 = vunpack.c.h.b16 %v1113
        %v1132 = vunpack.c.h.b16 %v1114
        %v1133 = vunpack.c.h.b16 %v1115
        %v1134 = vunpack.c.h.b16 %v1116
        %v1135 = vunpack.c.h.b16 %v1117
        %v1136 = vpack.c.b16 %v1125, %v1124
        %v1137 = vpack.c.b16 %v1127, %v1126
        %v1138 = vpack.c.b16 %v1129, %v1128
        %v1139 = vpack.c.b16 %v1131, %v1130
        %v1140 = vpack.c.b16 %v1133, %v1132
        %v1141 = vpack.c.b16 %v1135, %v1134
        %1148 = vst [vmem:[%s301] sm:$0xff] %v1136
        %1149 = vst [vmem:[%s301 + $0x8] sm:$0xff] %v1137
        %1150 = vst [vmem:[%s301 + $0x10] sm:$0xff] %v1138
        %1151 = vst [vmem:[%s301 + $0x18] sm:$0xff] %v1139
        %1152 = vst [vmem:[%s301 + $0x20] sm:$0xff] %v1140
        %1153 = vst [vmem:[%s301 + $0x28] sm:$0xff] %v1141
        %s1154 = sand.u32 %s158, 1
        %s1155 = scalar_lea.sflag [#allocation4], %s1154
        %s1156 = sand.u32 %s158, 1
        %s1157 = smul.addr %s1156, 48
        %s1158 = scalar_lea.vmem [#allocation10], %s1157
        // Predicated region
        $region57: #{tpu_custom_call.1} parent=39 // pred_check
          %p1159 = pneg %p168
        $region58: #{tpu_custom_call.1} parent=39 // pred_check_branch
          %1161 = sbr.rel (%p1159) target = $region60
        $region59: #{tpu_custom_call.1} parent=39 // pred_region
          %s1162 = smul.u32 2, %s29
          %s1164 = ssub.s32 768, 768
          %1165 = vsyncadd %s1155, %s1164
          %s1166 = smul.addr %s1162, 6
          %s1167 = smul.addr %s28, 12
          %s1168 = sadd.s32 %s1166, %s1167
          %s1169 = smul.addr %s1168, 64
          %s1170 = scalar_lea.hbm %s5, %s1169
          %s1171 = sshll.u32 %s1158, 4
          %s1172 = int_to_ptr.vmem [resolvable:$true] %s1171
          %1177 = dma.vmem_to_hbm [thread:$0]  %s1172, 768, %s1170, %s1155, 384, 384, 24
        $region60: #{tpu_custom_call.1} parent=39 // pred_fallthru
          _
      $region40: #{tpu_custom_call.1} parent=5 // pred_fallthru
        _
      %p1178 = scmp.le.s32.totalorder 2, %s19
      // Predicated region
      $region61: #{tpu_custom_call.1} parent=5 // pred_check
        %p1179 = pneg %p1178
      $region62: #{tpu_custom_call.1} parent=5 // pred_check_branch
        %1181 = sbr.rel (%p1179) target = $region64
      $region63: #{tpu_custom_call.1} parent=5 // pred_region
        %s1182 = ssub.s32 %s19, 2
        // Predicated region
        $region65: #{tpu_custom_call.1} parent=63 // pred_check
          %p1183 = pneg %p174
        $region66: #{tpu_custom_call.1} parent=63 // pred_check_branch
          %1185 = sbr.rel (%p1183) target = $region68
        $region67: #{tpu_custom_call.1} parent=63 // pred_region
          %s1186 = sand.u32 %s159, 1
          %s1187 = scalar_lea.sflag [#allocation4], %s1186
          %s1188 = sand.u32 %s159, 1
          %s1189 = smul.addr %s1188, 48
          %s1190 = scalar_lea.vmem [#allocation10], %s1189
          %1191 = dma.done %s1187, 768
        $region68: #{tpu_custom_call.1} parent=63 // pred_fallthru
          _
      $region64: #{tpu_custom_call.1} parent=5 // pred_fallthru
        _
    $region6: #{tpu_custom_call.1} parent=1 // loop_footer
      %s23 = sadd.s32 1, %s19
    $region7: #{tpu_custom_call.1} parent=1 // loop_footer_branch
      %18 = sbr.rel target = $region3
    $region8: #{tpu_custom_call.1} parent=1 // loop_exit
      _
    %1192 = vsyncpa [#allocation3], 1
    %s1193 = scalar_lea.sflag [#allocation3], 1
    %1194 = vsyncpa %s1193, 1
    %1195 = vsyncpa [#allocation6], 1
    %1196 = vsyncpa [#allocation9], 1
    %1197 = vsyncpa [#allocation4], 1
    %s1198 = scalar_lea.sflag [#allocation4], 1
    %1199 = vsyncpa %s1198, 1

</llo_original>
